<compile_context>
chip_gen: v7x
topology: tpu7x:2x2x1
jax: 0.10.0
libtpu: 0.0.40
codegen_flags: <defaults>
</compile_context>

<pallas_src>
import math

import jax
import jax.numpy as jnp
from jax.experimental import pallas as pl
from jax.experimental.pallas import tpu as pltpu

LANES = 128                      # lane width for every activation / weight col
WROWS = 128                      # weight rows padded to the lane width
BIAS_ROWS = 16                   # bias block rows (bf16 sublane tile = 16)
ROWS_PER_LAYER = WROWS + BIAS_ROWS   # 144 rows per packed layer (mult. of 16)
LAM_LANE = LANES - 1             # lambda rides in the last lane of the x plane
SUB = 16                         # batch-tile granularity (bf16 sublane pack)
TB_MAX = 2048                    # max batch tile (VMEM use ~5 MiB, fits v7x)


def _round_up(n, m):
    return ((n + m - 1) // m) * m


def _gelu(x):
    # TODO(synk): PyTorch nn.GELU() defaults to the exact erf formulation;
    # Mosaic does not reliably lower erf, so use the tanh approximation
    # (deviations at the ~1e-3 level).
    c = 0.7978845608028654  # sqrt(2/pi)
    return 0.5 * x * (1.0 + jnp.tanh(c * (x + 0.044715 * x * x * x)))


# --------------------------------------------------------------------------
# Kernel
# --------------------------------------------------------------------------
def _make_kernel(n_enc, n_head, input_size, head_off):
    """Fused kernel for fixed (static) encoder / fused-head layer counts."""

    def kernel(data_ref, p_ref, out_ref):
        # data_ref: (2, TB, 128) bf16
        #   plane 0: x      in lanes [0:input_size), lambda in lane LAM_LANE
        #   plane 1: x_perm in lanes [0:input_size)
        # p_ref:    ((n_enc+n_head)*144, 128) bf16 packed weight/bias slab
        # out_ref:  (TB, 128) f32 packed output plane:
        #   lanes [0:in) = mix, [in:in+emb) = z,
        #   lane head_off = sigmoid(mix_pred), lanes (head_off, head_off+rest]
        #   = rest_pred.
        x = data_ref[0, :, :].astype(jnp.float32)
        x_perm = data_ref[1, :, :].astype(jnp.float32)

        # lambda: per-row scalar stored in lane LAM_LANE; lane-broadcast here.
        lam = x[:, LAM_LANE:LAM_LANE + 1]                      # (TB, 1)

        # --- input mixing: mix = lamb * x + (1 - lamb) * x[perm] ------------
        # (lanes >= input_size carry junk; masked out below and multiplied by
        #  zero-padded weight rows, so they never contaminate anything.)
        mix = lam * x + (1.0 - lam) * x_perm                   # f32

        def layer(h, k, act):
            r0 = k * ROWS_PER_LAYER
            w = p_ref[r0:r0 + WROWS, :]                        # (128,128) bf16
            b = p_ref[r0 + WROWS:r0 + WROWS + 1, :].astype(jnp.float32)
            y = jnp.dot(h.astype(jnp.bfloat16), w,
                        preferred_element_type=jnp.float32) + b
            return _gelu(y) if act else y

        # --- encoder stack: [Linear + GELU] * n_enc --------------------------
        # Last encoder layer's weight columns are packed at lanes
        # [input_size : input_size+emb), so z lands in its output lanes.
        h = mix
        for k in range(n_enc):
            h = layer(h, k, act=True)
        z = h          # nonzero only in lanes [input_size : input_size+emb)

        # --- fused (mix || restore) head --------------------------------------
        # Final fused layer's columns are packed at lanes
        # [head_off : head_off+1+rest_out): lane head_off = mix logit.
        g = z
        for j in range(n_head):
            g = layer(g, n_enc + j, act=(j < n_head - 1))

        lane = jax.lax.broadcasted_iota(jnp.int32, mix.shape, 1)
        mix_masked = jnp.where(lane < input_size, mix, 0.0)
        head_out = jnp.where(lane == head_off, jax.nn.sigmoid(g), g)
        # mix_masked / z / head_out live in disjoint lane ranges -> one add.
        out_ref[...] = (mix_masked + z + head_out).astype(out_ref.dtype)

    return kernel


# --------------------------------------------------------------------------
# Parameter init (PyTorch-style) and host-side packing
# --------------------------------------------------------------------------
def _init_linear(key, fan_in, fan_out):
    """PyTorch Linear init: U(-1/sqrt(fan_in), 1/sqrt(fan_in)); stored (in, out)."""
    kw, kb = jax.random.split(key)
    bound = 1.0 / math.sqrt(fan_in)
    w = jax.random.uniform(kw, (fan_in, fan_out), jnp.float32, -bound, bound)
    b = jax.random.uniform(kb, (1, fan_out), jnp.float32, -bound, bound)
    return w, b


def init_mixencoder_params(key, input_size=27, hidden_size=10, emb_size=10,
                           enc_layers=4, mix_layers=2, restore_layers=2,
                           mode="xmix"):
    enc_dims = ([(input_size, hidden_size)]
                + [(hidden_size, hidden_size)] * (enc_layers - 2)
                + [(hidden_size, emb_size)])
    mix_dims = ([(emb_size, hidden_size)]
                + [(hidden_size, hidden_size)] * (mix_layers - 2)
                + [(hidden_size, 1)])
    rest_out = input_size if mode == "xmix" else emb_size
    rest_dims = ([(emb_size, hidden_size)]
                 + [(hidden_size, hidden_size)] * (restore_layers - 2)
                 + [(hidden_size, rest_out)])

    params = {"enc": [], "mix": [], "rest": []}
    for name, dims in (("enc", enc_dims), ("mix", mix_dims), ("rest", rest_dims)):
        for (fi, fo) in dims:
            key, sub = jax.random.split(key)
            params[name].append(_init_linear(sub, fi, fo))
    return params


def _block_diag(a, b):
    ra, ca = a.shape
    rb, cb = b.shape
    out = jnp.zeros((ra + rb, ca + cb), jnp.float32)
    return out.at[:ra, :ca].set(a).at[ra:, ca:].set(b)


def pack_params(params, input_size, emb_size):
    """Pack encoder + fused (mix || restore) head into one bf16 slab.

    Output-lane aware packing:
      * last encoder layer's columns at lanes [z_off : z_off+emb)
      * fused head layer 0's rows at  [z_off : z_off+emb)
      * final fused head layer's columns at lanes [head_off : head_off+1+rest)
    so z and the head predictions land directly in their packed output lanes.
    """
    enc, mixs, rest = params["enc"], params["mix"], params["rest"]
    assert len(mixs) == len(rest), (
        "head fusion assumes mix_layers == restore_layers")
    # TODO(synk): unequal head depths would need separate in-kernel chains.

    z_off = input_size
    head_off = input_size + emb_size

    def pad_block(w, b, row_off, col_off):
        fi, fo = w.shape
        assert row_off + fi <= WROWS and col_off + fo <= LANES, (
            "this fused kernel assumes all (fused) layer widths fit in 128")
        wp = jnp.zeros((WROWS, LANES), jnp.float32)
        wp = wp.at[row_off:row_off + fi, col_off:col_off + fo].set(w)
        bp = jnp.zeros((BIAS_ROWS, LANES), jnp.float32)
        bp = bp.at[0, col_off:col_off + fo].set(jnp.reshape(b, (-1,)))
        return jnp.concatenate([wp, bp], axis=0)        # (144, 128)

    blocks = []

    # encoder layers (last one writes into the z output lanes)
    for idx, (w, b) in enumerate(enc):
        col_off = z_off if idx == len(enc) - 1 else 0
        blocks.append(pad_block(w, b, 0, col_off))

    # fused head: layer 0 both heads read z -> column concat, rows at z_off;
    # later layers block-diagonal; final layer's columns at head_off.
    n_head = len(mixs)
    for j in range(n_head):
        (wm, bm), (wr, br) = mixs[j], rest[j]
        bm = jnp.reshape(bm, (-1,))
        br = jnp.reshape(br, (-1,))
        if j == 0:
            w = jnp.concatenate([wm, wr], axis=1)
            row_off = z_off
        else:
            w = _block_diag(wm, wr)
            row_off = 0
        b = jnp.concatenate([bm, br])
        col_off = head_off if j == n_head - 1 else 0
        blocks.append(pad_block(w, b, row_off, col_off))

    slab = jnp.concatenate(blocks, axis=0).astype(jnp.bfloat16)
    return slab, len(enc), n_head, z_off, head_off


# --------------------------------------------------------------------------
# Forward pass ('xmix' mode)
# --------------------------------------------------------------------------
def mixencoder_forward(x, params, *, alpha=5.0, beta=2.0,
                       u_thresh=0.9, l_thresh=0.5, key=None):
    """'xmix' mode forward pass. Returns the same dict as the PyTorch module."""
    B, input_size = x.shape
    x = x.astype(jnp.float32)

    # mixer(): per-row lambda ~ Beta(alpha, beta) clipped to [l, u] paired with
    # a random batch permutation.
    # TODO(synk): exact `mixer` source not shown in the module; standard
    # clipped-Beta mixup semantics assumed.
    klam, kperm = jax.random.split(key)
    lamb = jax.random.beta(klam, alpha, beta, (B, 1)).astype(jnp.float32)
    lamb = jnp.clip(lamb, l_thresh, u_thresh)
    perm = jax.random.permutation(kperm, B)
    x_perm = x[perm]

    emb_size = params["enc"][-1][0].shape[1]
    rest_out = params["rest"][-1][0].shape[1]

    slab, n_enc, n_head, z_off, head_off = pack_params(params, input_size,
                                                       emb_size)
    slab_rows = slab.shape[0]
    assert input_size < LANES
    assert head_off + 1 + rest_out <= LANES

    # --- batch tiling --------------------------------------------------------
    # Large tiles amortize the ~0.35us/step pipeline overhead; at least 2 grid
    # steps whenever B allows it so both v7x TensorCores get work (free on
    # v5e/v6e).  Working set at TB_MAX is ~5 MiB, far below every VMEM budget.
    Bp_min = _round_up(B, SUB)
    if Bp_min >= 2 * TB_MAX:
        TB = TB_MAX
    elif Bp_min > SUB:
        TB = _round_up(-(-Bp_min // 2), SUB)      # split into ~2 tiles
    else:
        TB = SUB
    Bp = _round_up(B, TB)

    # --- pack inputs: (2, Bp, 128) bf16, lambda in lane LAM_LANE of plane 0.
    xb = x.astype(jnp.bfloat16)
    xpb = x_perm.astype(jnp.bfloat16)
    lam_b = lamb.astype(jnp.bfloat16)
    plane0 = jnp.concatenate(
        [xb, jnp.zeros((B, LANES - input_size - 1), jnp.bfloat16), lam_b],
        axis=1)
    plane1 = jnp.concatenate(
        [xpb, jnp.zeros((B, LANES - input_size), jnp.bfloat16)], axis=1)
    data = jnp.stack([plane0, plane1], axis=0)            # (2, B, 128)
    if Bp != B:
        data = jnp.pad(data, ((0, 0), (0, Bp - B), (0, 0)))

    out = pl.pallas_call(
        _make_kernel(n_enc, n_head, input_size, head_off),
        out_shape=jax.ShapeDtypeStruct((Bp, LANES), jnp.float32),
        grid=(Bp // TB,),
        in_specs=[
            pl.BlockSpec((2, TB, LANES), lambda i: (0, i, 0)),
            # constant block index -> packed weight slab fetched once and kept
            # VMEM-resident (its default double buffer is only ~0.6 MiB).
            pl.BlockSpec((slab_rows, LANES), lambda i: (0, 0)),
        ],
        out_specs=pl.BlockSpec((TB, LANES), lambda i: (i, 0)),
        compiler_params=pltpu.CompilerParams(
            dimension_semantics=("parallel",),
            vmem_limit_bytes=48 * 1024 * 1024),
    )(data, slab)

    mix = out[:B, :input_size]
    z = out[:B, z_off:z_off + emb_size]
    mix_pred = out[:B, head_off:head_off + 1]
    rest_pred = out[:B, head_off + 1:head_off + 1 + rest_out]

    return {
        "rest_pred": rest_pred,
        "mix_pred": mix_pred,
        "lambda": lamb,
        "z": z,
        "mix": mix,
        "output": x,      # xmix mode: output is the original input
    }


# --------------------------------------------------------------------------
# Pure-JAX reference (f32 everywhere, same tanh-GELU) for a sanity check
# --------------------------------------------------------------------------
def _ref_forward(x, params, lamb, perm):
    x = x.astype(jnp.float32)
    mix = lamb * x + (1.0 - lamb) * x[perm]
    h = mix
    for (w, b) in params["enc"]:
        h = _gelu(h @ w + jnp.reshape(b, (1, -1)))
    z = h
    gm = z
    for i, (w, b) in enumerate(params["mix"]):
        gm = gm @ w + jnp.reshape(b, (1, -1))
        if i < len(params["mix"]) - 1:
            gm = _gelu(gm)
    mix_pred = jax.nn.sigmoid(gm)
    gr = z
    for i, (w, b) in enumerate(params["rest"]):
        gr = gr @ w + jnp.reshape(b, (1, -1))
        if i < len(params["rest"]) - 1:
            gr = _gelu(gr)
    return {"mix": mix, "z": z, "mix_pred": mix_pred, "rest_pred": gr}


if __name__ == "__main__":
    # Small shapes consistent with the module defaults.
    B = 24
    input_size, hidden_size, emb_size = 27, 10, 10
    enc_layers, mix_layers, restore_layers = 4, 2, 2

    root = jax.random.PRNGKey(0)
    kparam, kx, kmix = jax.random.split(root, 3)

    params = init_mixencoder_params(
        kparam, input_size=input_size, hidden_size=hidden_size,
        emb_size=emb_size, enc_layers=enc_layers, mix_layers=mix_layers,
        restore_layers=restore_layers, mode="xmix")

    x = jax.random.normal(kx, (B, input_size), jnp.float32)

    out = mixencoder_forward(x, params, alpha=5.0, beta=2.0,
                             u_thresh=0.9, l_thresh=0.5, key=kmix)
    jax.block_until_ready(out)

    # shape sanity
    assert out["rest_pred"].shape == (B, input_size)
    assert out["mix_pred"].shape == (B, 1)
    assert out["z"].shape == (B, emb_size)
    assert out["mix"].shape == (B, input_size)
    assert out["lambda"].shape == (B, 1)

    # numerical sanity vs. f32 reference (reproduce the mixer RNG split).
    _, kperm = jax.random.split(kmix)
    perm = jax.random.permutation(kperm, B)
    ref = _ref_forward(x, params, out["lambda"], perm)
    for name in ("mix", "z", "mix_pred", "rest_pred"):
        diff = float(jnp.max(jnp.abs(out[name] - ref[name])))
        # bf16 inputs / bf16 MXU operands with f32 accumulation -> ~1e-2 level
        assert diff < 0.1, f"{name} max abs diff {diff}"

    print("KERNEL_OK")
</pallas_src>

<mosaic_0001>
module attributes {stable_mosaic.version = 11 : i64} {
  func.func @kernel(%arg0: i32, %arg1: memref<2x16x128xbf16, #tpu.memory_space<vmem>>, %arg2: memref<864x128xbf16, #tpu.memory_space<vmem>>, %arg3: memref<16x128xf32, #tpu.memory_space<vmem>>) attributes {dimension_semantics = [#tpu.dimension_semantics<parallel>], iteration_bounds = array<i64: 2>, scalar_prefetch = 0 : i64, scratch_operands = 0 : i64, tpu.core_type = #tpu.core_type<tc>, window_params = [{transform_indices = @transform_0, window_bounds = array<i64: 2, 16, 128>}, {pipeline_mode = #tpu.pipeline_mode<synchronous>, transform_indices = @transform_1, window_bounds = array<i64: 864, 128>}, {transform_indices = @transform_2, window_bounds = array<i64: 16, 128>}]} {
    %c0 = arith.constant 0 : index
    %c0_0 = arith.constant 0 : index
    %c0_1 = arith.constant 0 : index
    %0 = vector.load %arg1[%c0, %c0_0, %c0_1] : memref<2x16x128xbf16, #tpu.memory_space<vmem>>, vector<1x16x128xbf16>
    %1 = vector.shape_cast %0 : vector<1x16x128xbf16> to vector<16x128xbf16>
    %2 = arith.extf %1 : vector<16x128xbf16> to vector<16x128xf32>
    %c1 = arith.constant 1 : index
    %c0_2 = arith.constant 0 : index
    %c0_3 = arith.constant 0 : index
    %3 = vector.load %arg1[%c1, %c0_2, %c0_3] : memref<2x16x128xbf16, #tpu.memory_space<vmem>>, vector<1x16x128xbf16>
    %4 = vector.shape_cast %3 : vector<1x16x128xbf16> to vector<16x128xbf16>
    %5 = arith.extf %4 : vector<16x128xbf16> to vector<16x128xf32>
    %6 = vector.extract_strided_slice %2 {offsets = [0, 127], sizes = [16, 1], strides = [1, 1]} : vector<16x128xf32> to vector<16x1xf32>
    %7 = vector.broadcast %6 : vector<16x1xf32> to vector<16x128xf32>
    %8 = arith.mulf %7, %2 : vector<16x128xf32>
    %cst = arith.constant 1.000000e+00 : f32
    %9 = vector.broadcast %cst : f32 to vector<16x1xf32>
    %10 = arith.subf %9, %6 : vector<16x1xf32>
    %11 = vector.broadcast %10 : vector<16x1xf32> to vector<16x128xf32>
    %12 = arith.mulf %11, %5 : vector<16x128xf32>
    %13 = arith.addf %8, %12 : vector<16x128xf32>
    %c0_4 = arith.constant 0 : index
    %c0_5 = arith.constant 0 : index
    %14 = vector.load %arg2[%c0_4, %c0_5] : memref<864x128xbf16, #tpu.memory_space<vmem>>, vector<128x128xbf16>
    %c128 = arith.constant 128 : index
    %c0_6 = arith.constant 0 : index
    %15 = vector.load %arg2[%c128, %c0_6] : memref<864x128xbf16, #tpu.memory_space<vmem>>, vector<1x128xbf16>
    %16 = arith.extf %15 : vector<1x128xbf16> to vector<1x128xf32>
    %17 = arith.truncf %13 : vector<16x128xf32> to vector<16x128xbf16>
    %cst_7 = arith.constant dense<0.000000e+00> : vector<16x128xf32>
    %18 = tpu.matmul %17, %14, %cst_7 {dimension_numbers = #tpu.dot_dimension_numbers<[1], [0], [0], [1], [0, 0, 1, 1], [], []>} : vector<16x128xbf16>, vector<128x128xbf16>, vector<16x128xf32> -> vector<16x128xf32>
    %19 = vector.broadcast %16 : vector<1x128xf32> to vector<16x128xf32>
    %20 = arith.addf %18, %19 : vector<16x128xf32>
    %cst_8 = arith.constant 5.000000e-01 : f32
    %21 = vector.broadcast %cst_8 : f32 to vector<16x128xf32>
    %22 = arith.mulf %21, %20 : vector<16x128xf32>
    %cst_9 = arith.constant 4.471500e-02 : f32
    %23 = vector.broadcast %cst_9 : f32 to vector<16x128xf32>
    %24 = arith.mulf %23, %20 : vector<16x128xf32>
    %25 = arith.mulf %24, %20 : vector<16x128xf32>
    %26 = arith.mulf %25, %20 : vector<16x128xf32>
    %27 = arith.addf %20, %26 : vector<16x128xf32>
    %cst_10 = arith.constant 0.797884583 : f32
    %28 = vector.broadcast %cst_10 : f32 to vector<16x128xf32>
    %29 = arith.mulf %28, %27 : vector<16x128xf32>
    %30 = math.tanh %29 : vector<16x128xf32>
    %cst_11 = arith.constant 1.000000e+00 : f32
    %31 = vector.broadcast %cst_11 : f32 to vector<16x128xf32>
    %32 = arith.addf %31, %30 : vector<16x128xf32>
    %33 = arith.mulf %22, %32 : vector<16x128xf32>
    %c144 = arith.constant 144 : index
    %c0_12 = arith.constant 0 : index
    %34 = vector.load %arg2[%c144, %c0_12] : memref<864x128xbf16, #tpu.memory_space<vmem>>, vector<128x128xbf16>
    %c272 = arith.constant 272 : index
    %c0_13 = arith.constant 0 : index
    %35 = vector.load %arg2[%c272, %c0_13] : memref<864x128xbf16, #tpu.memory_space<vmem>>, vector<1x128xbf16>
    %36 = arith.extf %35 : vector<1x128xbf16> to vector<1x128xf32>
    %37 = arith.truncf %33 : vector<16x128xf32> to vector<16x128xbf16>
    %cst_14 = arith.constant dense<0.000000e+00> : vector<16x128xf32>
    %38 = tpu.matmul %37, %34, %cst_14 {dimension_numbers = #tpu.dot_dimension_numbers<[1], [0], [0], [1], [0, 0, 1, 1], [], []>} : vector<16x128xbf16>, vector<128x128xbf16>, vector<16x128xf32> -> vector<16x128xf32>
    %39 = vector.broadcast %36 : vector<1x128xf32> to vector<16x128xf32>
    %40 = arith.addf %38, %39 : vector<16x128xf32>
    %cst_15 = arith.constant 5.000000e-01 : f32
    %41 = vector.broadcast %cst_15 : f32 to vector<16x128xf32>
    %42 = arith.mulf %41, %40 : vector<16x128xf32>
    %cst_16 = arith.constant 4.471500e-02 : f32
    %43 = vector.broadcast %cst_16 : f32 to vector<16x128xf32>
    %44 = arith.mulf %43, %40 : vector<16x128xf32>
    %45 = arith.mulf %44, %40 : vector<16x128xf32>
    %46 = arith.mulf %45, %40 : vector<16x128xf32>
    %47 = arith.addf %40, %46 : vector<16x128xf32>
    %cst_17 = arith.constant 0.797884583 : f32
    %48 = vector.broadcast %cst_17 : f32 to vector<16x128xf32>
    %49 = arith.mulf %48, %47 : vector<16x128xf32>
    %50 = math.tanh %49 : vector<16x128xf32>
    %cst_18 = arith.constant 1.000000e+00 : f32
    %51 = vector.broadcast %cst_18 : f32 to vector<16x128xf32>
    %52 = arith.addf %51, %50 : vector<16x128xf32>
    %53 = arith.mulf %42, %52 : vector<16x128xf32>
    %c288 = arith.constant 288 : index
    %c0_19 = arith.constant 0 : index
    %54 = vector.load %arg2[%c288, %c0_19] : memref<864x128xbf16, #tpu.memory_space<vmem>>, vector<128x128xbf16>
    %c416 = arith.constant 416 : index
    %c0_20 = arith.constant 0 : index
    %55 = vector.load %arg2[%c416, %c0_20] : memref<864x128xbf16, #tpu.memory_space<vmem>>, vector<1x128xbf16>
    %56 = arith.extf %55 : vector<1x128xbf16> to vector<1x128xf32>
    %57 = arith.truncf %53 : vector<16x128xf32> to vector<16x128xbf16>
    %cst_21 = arith.constant dense<0.000000e+00> : vector<16x128xf32>
    %58 = tpu.matmul %57, %54, %cst_21 {dimension_numbers = #tpu.dot_dimension_numbers<[1], [0], [0], [1], [0, 0, 1, 1], [], []>} : vector<16x128xbf16>, vector<128x128xbf16>, vector<16x128xf32> -> vector<16x128xf32>
    %59 = vector.broadcast %56 : vector<1x128xf32> to vector<16x128xf32>
    %60 = arith.addf %58, %59 : vector<16x128xf32>
    %cst_22 = arith.constant 5.000000e-01 : f32
    %61 = vector.broadcast %cst_22 : f32 to vector<16x128xf32>
    %62 = arith.mulf %61, %60 : vector<16x128xf32>
    %cst_23 = arith.constant 4.471500e-02 : f32
    %63 = vector.broadcast %cst_23 : f32 to vector<16x128xf32>
    %64 = arith.mulf %63, %60 : vector<16x128xf32>
    %65 = arith.mulf %64, %60 : vector<16x128xf32>
    %66 = arith.mulf %65, %60 : vector<16x128xf32>
    %67 = arith.addf %60, %66 : vector<16x128xf32>
    %cst_24 = arith.constant 0.797884583 : f32
    %68 = vector.broadcast %cst_24 : f32 to vector<16x128xf32>
    %69 = arith.mulf %68, %67 : vector<16x128xf32>
    %70 = math.tanh %69 : vector<16x128xf32>
    %cst_25 = arith.constant 1.000000e+00 : f32
    %71 = vector.broadcast %cst_25 : f32 to vector<16x128xf32>
    %72 = arith.addf %71, %70 : vector<16x128xf32>
    %73 = arith.mulf %62, %72 : vector<16x128xf32>
    %c432 = arith.constant 432 : index
    %c0_26 = arith.constant 0 : index
    %74 = vector.load %arg2[%c432, %c0_26] : memref<864x128xbf16, #tpu.memory_space<vmem>>, vector<128x128xbf16>
    %c560 = arith.constant 560 : index
    %c0_27 = arith.constant 0 : index
    %75 = vector.load %arg2[%c560, %c0_27] : memref<864x128xbf16, #tpu.memory_space<vmem>>, vector<1x128xbf16>
    %76 = arith.extf %75 : vector<1x128xbf16> to vector<1x128xf32>
    %77 = arith.truncf %73 : vector<16x128xf32> to vector<16x128xbf16>
    %cst_28 = arith.constant dense<0.000000e+00> : vector<16x128xf32>
    %78 = tpu.matmul %77, %74, %cst_28 {dimension_numbers = #tpu.dot_dimension_numbers<[1], [0], [0], [1], [0, 0, 1, 1], [], []>} : vector<16x128xbf16>, vector<128x128xbf16>, vector<16x128xf32> -> vector<16x128xf32>
    %79 = vector.broadcast %76 : vector<1x128xf32> to vector<16x128xf32>
    %80 = arith.addf %78, %79 : vector<16x128xf32>
    %cst_29 = arith.constant 5.000000e-01 : f32
    %81 = vector.broadcast %cst_29 : f32 to vector<16x128xf32>
    %82 = arith.mulf %81, %80 : vector<16x128xf32>
    %cst_30 = arith.constant 4.471500e-02 : f32
    %83 = vector.broadcast %cst_30 : f32 to vector<16x128xf32>
    %84 = arith.mulf %83, %80 : vector<16x128xf32>
    %85 = arith.mulf %84, %80 : vector<16x128xf32>
    %86 = arith.mulf %85, %80 : vector<16x128xf32>
    %87 = arith.addf %80, %86 : vector<16x128xf32>
    %cst_31 = arith.constant 0.797884583 : f32
    %88 = vector.broadcast %cst_31 : f32 to vector<16x128xf32>
    %89 = arith.mulf %88, %87 : vector<16x128xf32>
    %90 = math.tanh %89 : vector<16x128xf32>
    %cst_32 = arith.constant 1.000000e+00 : f32
    %91 = vector.broadcast %cst_32 : f32 to vector<16x128xf32>
    %92 = arith.addf %91, %90 : vector<16x128xf32>
    %93 = arith.mulf %82, %92 : vector<16x128xf32>
    %c576 = arith.constant 576 : index
    %c0_33 = arith.constant 0 : index
    %94 = vector.load %arg2[%c576, %c0_33] : memref<864x128xbf16, #tpu.memory_space<vmem>>, vector<128x128xbf16>
    %c704 = arith.constant 704 : index
    %c0_34 = arith.constant 0 : index
    %95 = vector.load %arg2[%c704, %c0_34] : memref<864x128xbf16, #tpu.memory_space<vmem>>, vector<1x128xbf16>
    %96 = arith.extf %95 : vector<1x128xbf16> to vector<1x128xf32>
    %97 = arith.truncf %93 : vector<16x128xf32> to vector<16x128xbf16>
    %cst_35 = arith.constant dense<0.000000e+00> : vector<16x128xf32>
    %98 = tpu.matmul %97, %94, %cst_35 {dimension_numbers = #tpu.dot_dimension_numbers<[1], [0], [0], [1], [0, 0, 1, 1], [], []>} : vector<16x128xbf16>, vector<128x128xbf16>, vector<16x128xf32> -> vector<16x128xf32>
    %99 = vector.broadcast %96 : vector<1x128xf32> to vector<16x128xf32>
    %100 = arith.addf %98, %99 : vector<16x128xf32>
    %cst_36 = arith.constant 5.000000e-01 : f32
    %101 = vector.broadcast %cst_36 : f32 to vector<16x128xf32>
    %102 = arith.mulf %101, %100 : vector<16x128xf32>
    %cst_37 = arith.constant 4.471500e-02 : f32
    %103 = vector.broadcast %cst_37 : f32 to vector<16x128xf32>
    %104 = arith.mulf %103, %100 : vector<16x128xf32>
    %105 = arith.mulf %104, %100 : vector<16x128xf32>
    %106 = arith.mulf %105, %100 : vector<16x128xf32>
    %107 = arith.addf %100, %106 : vector<16x128xf32>
    %cst_38 = arith.constant 0.797884583 : f32
    %108 = vector.broadcast %cst_38 : f32 to vector<16x128xf32>
    %109 = arith.mulf %108, %107 : vector<16x128xf32>
    %110 = math.tanh %109 : vector<16x128xf32>
    %cst_39 = arith.constant 1.000000e+00 : f32
    %111 = vector.broadcast %cst_39 : f32 to vector<16x128xf32>
    %112 = arith.addf %111, %110 : vector<16x128xf32>
    %113 = arith.mulf %102, %112 : vector<16x128xf32>
    %c720 = arith.constant 720 : index
    %c0_40 = arith.constant 0 : index
    %114 = vector.load %arg2[%c720, %c0_40] : memref<864x128xbf16, #tpu.memory_space<vmem>>, vector<128x128xbf16>
    %c848 = arith.constant 848 : index
    %c0_41 = arith.constant 0 : index
    %115 = vector.load %arg2[%c848, %c0_41] : memref<864x128xbf16, #tpu.memory_space<vmem>>, vector<1x128xbf16>
    %116 = arith.extf %115 : vector<1x128xbf16> to vector<1x128xf32>
    %117 = arith.truncf %113 : vector<16x128xf32> to vector<16x128xbf16>
    %cst_42 = arith.constant dense<0.000000e+00> : vector<16x128xf32>
    %118 = tpu.matmul %117, %114, %cst_42 {dimension_numbers = #tpu.dot_dimension_numbers<[1], [0], [0], [1], [0, 0, 1, 1], [], []>} : vector<16x128xbf16>, vector<128x128xbf16>, vector<16x128xf32> -> vector<16x128xf32>
    %119 = vector.broadcast %116 : vector<1x128xf32> to vector<16x128xf32>
    %120 = arith.addf %118, %119 : vector<16x128xf32>
    %121 = tpu.iota {dimensions = array<i32: 1>} : vector<16x128xi32>
    %c27_i32 = arith.constant 27 : i32
    %122 = vector.broadcast %c27_i32 : i32 to vector<16x128xi32>
    %123 = arith.cmpi slt, %121, %122 : vector<16x128xi32>
    %cst_43 = arith.constant 0.000000e+00 : f32
    %124 = vector.broadcast %cst_43 : f32 to vector<16x128xf32>
    %125 = arith.select %123, %13, %124 : vector<16x128xi1>, vector<16x128xf32>
    %c37_i32 = arith.constant 37 : i32
    %126 = vector.broadcast %c37_i32 : i32 to vector<16x128xi32>
    %127 = arith.cmpi eq, %121, %126 : vector<16x128xi32>
    %128 = arith.negf %120 : vector<16x128xf32>
    %129 = math.exp %128 : vector<16x128xf32>
    %cst_44 = arith.constant 1.000000e+00 : f32
    %130 = vector.broadcast %cst_44 : f32 to vector<16x128xf32>
    %131 = arith.addf %130, %129 : vector<16x128xf32>
    %132 = arith.divf %130, %131 : vector<16x128xf32>
    %133 = arith.select %127, %132, %120 : vector<16x128xi1>, vector<16x128xf32>
    %134 = arith.addf %125, %93 : vector<16x128xf32>
    %135 = arith.addf %134, %133 : vector<16x128xf32>
    %c0_45 = arith.constant 0 : index
    %c0_46 = arith.constant 0 : index
    %136 = vector.load %arg3[%c0_45, %c0_46] : memref<16x128xf32, #tpu.memory_space<vmem>>, vector<16x128xf32>
    tpu.vector_store %arg3[%c0_45, %c0_46], %135 {strides = array<i32>} : memref<16x128xf32, #tpu.memory_space<vmem>>, vector<16x128xf32>,
    return
  }
  func.func @transform_0(%arg0: i32) -> (i32, i32, i32) {
    %c0_i32 = arith.constant 0 : i32
    %c0_i32_0 = arith.constant 0 : i32
    %c0_i32_1 = arith.constant 0 : i32
    return %c0_i32, %arg0, %c0_i32_0 : i32, i32, i32
  }
  func.func @transform_1(%arg0: i32) -> (i32, i32) {
    %c0_i32 = arith.constant 0 : i32
    %c0_i32_0 = arith.constant 0 : i32
    %c0_i32_1 = arith.constant 0 : i32
    return %c0_i32, %c0_i32_0 : i32, i32
  }
  func.func @transform_2(%arg0: i32) -> (i32, i32) {
    %c0_i32 = arith.constant 0 : i32
    %c0_i32_0 = arith.constant 0 : i32
    return %arg0, %c0_i32 : i32, i32
  }
}

</mosaic_0001>

<llo_original>
// kernel: tpu_custom_call.1
$region0: #{tpu_custom_call.1}
  #allocation0 [shape = 'u32[]', space=smem, size = 0x4, offset = 0x4, fixed_abs, tag = 'smem constant byte address 0x4 - core index']
  #allocation1 [shape = 'u32[144,128]{1,0:T(1,128)}', space=vmem, size = 0x12000, scoped, tag = 'internal scratch']
  #allocation8 [shape = 's32[]', space=sflag, size = 0x4, offset = 0, fixed_abs, tag = 'sflag constant byte address 0x0 - dummy sync flag']
  %s0 = inlined_call_operand.hbm [shape: bf16[2,32,128], index: 0, kind: input, shape index: {}]
  %s1 = inlined_call_operand.hbm [shape: bf16[864,128], index: 1, kind: input, shape index: {}]
  %s2 = inlined_call_operand.hbm [shape: f32[32,128], index: 2, kind: output, shape index: {}]
  %s3 = sld [smem:[#allocation0]]
  $region49: #{tpu_custom_call.1} parent=0
    _
  %s5 = ssub.s32 1, %s3
  %s6 = scalar_select 0, %s5, %s3
  $region1: #{tpu_custom_call.1} parent=0
    #allocation2 [shape = 'u8[16384]{0}', space=vmem, size = 0x4000, scoped, tag = 'input window, operand 0']
    #allocation3 [shape = 's32[2]{0}', space=sflag, size = 0x8, scoped, tag = 'scoped memory for tpu_custom_call.1']
    #allocation4 [shape = 's32[2]{0}', space=sflag, size = 0x8, scoped, tag = 'scoped memory for tpu_custom_call.1']
    #allocation5 [shape = 'u8[221184]{0}', space=vmem, size = 0x36000, scoped, tag = 'input window, operand 1, single buffered']
    #allocation6 [shape = 's32[1]{0}', space=sflag, size = 0x4, scoped, tag = 'scoped memory for tpu_custom_call.1']
    #allocation7 [shape = 'u8[16384]{0}', space=vmem, size = 0x4000, scoped, tag = 'output window, operand 0']
    %7 = vsyncpa [#allocation3], 0
    %s8 = scalar_lea.sflag [#allocation3], 1
    %9 = vsyncpa %s8, 0
    %10 = vsyncpa [#allocation6], 0
    %11 = vsyncpa [#allocation4], 0
    %s12 = scalar_lea.sflag [#allocation4], 1
    %13 = vsyncpa %s12, 0
    loop: start=0, step=1, limit=4
    $region2: #{tpu_custom_call.1} parent=1 // loop_pre_header
      _
    $region3: #{tpu_custom_call.1} parent=1 // loop_header
      %s15 = sphi 0, %s19
      %p16 = scmp.ge.s32.totalorder %s15, 4
      %s25 = sphi 0, %s27
      %s28 = sphi 0, %s25
      %s29 = sphi 0, %s28
      %s45 = sphi 0, %s29
      %s49 = sphi 0, %s49
      %s51 = sphi 0, %s49
      %s52 = sphi 0, %s51
      %s66 = sphi 0, %s52
      %s72 = sphi 0, %s74
      %s75 = sphi 0, %s72
      %s76 = sphi 0, %s75
      %s92 = sphi 0, %s76
    $region4: #{tpu_custom_call.1} parent=1 // loop_header_branch
      %18 = sbr.rel (%p16) target = $region8
    $region5: #{tpu_custom_call.1} parent=1 // loop_body
      %s20 = ssub.s32 %s15, 1
      %s21 = ssub.s32 %s15, 2
      %s22 = sadd.s32 %s15, 1
      %s23 = ssub.s32 %s15, %s22
      %p24 = scmp.eq.s32.totalorder %s23, 0
      %s26 = sadd.s32 %s25, 1
      %s27 = scalar_select %p24, %s25, %s26
      %p30 = pneg %p24
      %p31 = scmp.eq.s32.totalorder %s15, 1
      %p32 = por %p30, %p31
      %p33 = scmp.ne.s32.totalorder %s25, %s28
      %p34 = scmp.eq.s32.totalorder %s15, 0
      %p35 = por %p33, %p34
      %p36 = scmp.ne.s32.totalorder %s25, %s28
      %p37 = scmp.eq.s32.totalorder %s20, 1
      %p38 = por %p36, %p37
      %p39 = scmp.ne.s32.totalorder %s28, %s29
      %p40 = scmp.eq.s32.totalorder %s20, 0
      %p41 = por %p39, %p40
      %p42 = scmp.ne.s32.totalorder %s28, %s29
      %p43 = scmp.eq.s32.totalorder %s21, 1
      %p44 = por %p42, %p43
      %p46 = scmp.ne.s32.totalorder %s29, %s45
      %p47 = scmp.eq.s32.totalorder %s21, 0
      %p48 = por %p46, %p47
      %s50 = sadd.s32 %s49, 1
      %p53 = scmp.eq.s32.totalorder %s15, 1
      %p54 = scmp.ne.s32.totalorder %s49, %s51
      %p55 = scmp.eq.s32.totalorder %s15, 0
      %p56 = por %p54, %p55
      %p57 = scmp.ne.s32.totalorder %s49, %s51
      %p58 = scmp.eq.s32.totalorder %s20, 1
      %p59 = por %p57, %p58
      %p60 = scmp.ne.s32.totalorder %s51, %s52
      %p61 = scmp.eq.s32.totalorder %s20, 0
      %p62 = por %p60, %p61
      %p63 = scmp.ne.s32.totalorder %s51, %s52
      %p64 = scmp.eq.s32.totalorder %s21, 1
      %p65 = por %p63, %p64
      %p67 = scmp.ne.s32.totalorder %s52, %s66
      %p68 = scmp.eq.s32.totalorder %s21, 0
      %p69 = por %p67, %p68
      %s70 = ssub.s32 %s15, %s22
      %p71 = scmp.eq.s32.totalorder %s70, 0
      %s73 = sadd.s32 %s72, 1
      %s74 = scalar_select %p71, %s72, %s73
      %p77 = pneg %p71
      %p78 = scmp.eq.s32.totalorder %s15, 1
      %p79 = por %p77, %p78
      %p80 = scmp.ne.s32.totalorder %s72, %s75
      %p81 = scmp.eq.s32.totalorder %s15, 0
      %p82 = por %p80, %p81
      %p83 = scmp.ne.s32.totalorder %s72, %s75
      %p84 = scmp.eq.s32.totalorder %s20, 1
      %p85 = por %p83, %p84
      %p86 = scmp.ne.s32.totalorder %s75, %s76
      %p87 = scmp.eq.s32.totalorder %s20, 0
      %p88 = por %p86, %p87
      %p89 = scmp.ne.s32.totalorder %s75, %s76
      %p90 = scmp.eq.s32.totalorder %s21, 1
      %p91 = por %p89, %p90
      %p93 = scmp.ne.s32.totalorder %s76, %s92
      %p94 = scmp.eq.s32.totalorder %s21, 0
      %p95 = por %p93, %p94
      %p96 = scmp.le.s32.totalorder 1, %s15
      %p97 = scmp.lt.s32.totalorder %s15, 3
      %p98 = pnand %p96, %p97
      %p99 = pneg %p98
      // Predicated region
      $region9: #{tpu_custom_call.1} parent=5 // pred_check
        _
      $region10: #{tpu_custom_call.1} parent=5 // pred_check_branch
        %101 = sbr.rel (%p98) target = $region12
      $region11: #{tpu_custom_call.1} parent=5 // pred_region
        %s102 = ssub.s32 %s15, 1
        // Predicated region
        $region13: #{tpu_custom_call.1} parent=11 // pred_check
          %p103 = pneg %p62
        $region14: #{tpu_custom_call.1} parent=11 // pred_check_branch
          %105 = sbr.rel (%p103) target = $region16
        $region15: #{tpu_custom_call.1} parent=11 // pred_region
          %s107 = ssub.s32 6912, 6912
          %108 = vsyncadd [#allocation6], %s107
          %s109 = sshll.u32 [#allocation5], 4
          %s110 = int_to_ptr.vmem [resolvable:$true] %s109
          %115 = dma.hbm_to_vmem [thread:$0]  %s1, 6912, %s110, [#allocation6], 64, 64, 4
        $region16: #{tpu_custom_call.1} parent=11 // pred_fallthru
          _
      $region12: #{tpu_custom_call.1} parent=5 // pred_fallthru
        _
      %p116 = scmp.lt.s32.totalorder %s15, 2
      // Predicated region
      $region17: #{tpu_custom_call.1} parent=5 // pred_check
        %p117 = pneg %p116
      $region18: #{tpu_custom_call.1} parent=5 // pred_check_branch
        %119 = sbr.rel (%p117) target = $region20
      $region19: #{tpu_custom_call.1} parent=5 // pred_region
        // Predicated region
        $region21: #{tpu_custom_call.1} parent=19 // pred_check
          %p120 = pneg %p35
        $region22: #{tpu_custom_call.1} parent=19 // pred_check_branch
          %122 = sbr.rel (%p120) target = $region24
        $region23: #{tpu_custom_call.1} parent=19 // pred_region
          #allocation9 [shape = 'u32[6]{0}', space=smem, size = 0x18, scoped, tag = 'DMA stride descriptor']
          %s123 = sand.u32 %s25, 1
          %s124 = scalar_lea.sflag [#allocation3], %s123
          %s125 = sand.u32 %s25, 1
          %s126 = smul.addr %s125, 16
          %s127 = scalar_lea.vmem [#allocation2], %s126
          %s128 = smul.u32 2, %s15
          %s130 = ssub.s32 256, 256
          %131 = vsyncadd %s124, %s130
          %s132 = smul.addr %s128, 64
          %s133 = scalar_lea.hbm %s0, %s132
          %s135 = sshll.u32 1, 14
          %s136 = sxor.u32 4294967295, %s135
          %s138 = sld [smem:[#allocation0]]
          %s139 = sadd.s32 2, %s138
          %s141 = sshll.u32 7, 26
          %s142 = sxor.u32 4294967295, %s141
          %s143 = sand.u32 0, %s142
          %s144 = sshll.u32 %s139, 26
          %s145 = sor.u32 %s143, %s144
          %s146 = sshll.u32 %s127, 4
          %s147 = int_to_ptr.vmem [resolvable:$true] %s146
          %153 = sst [smem:[#allocation9]] 256
          %s154 = scalar_lea.smem [#allocation9], 1
          %155 = sst [smem:[%s154]] 128
          %s156 = scalar_lea.smem [#allocation9], 2
          %157 = sst [smem:[%s156]] 2
          %s158 = scalar_lea.smem [#allocation9], 3
          %159 = sst [smem:[%s158]] 64
          %s160 = scalar_lea.smem [#allocation9], 4
          %161 = sst [smem:[%s160]] 64
          %s162 = scalar_lea.smem [#allocation9], 5
          %163 = sst [smem:[%s162]] 4
          %165 = dma.general %s133, 256, %s147, %s124, [#allocation8], [#allocation9], %s145, 0
        $region24: #{tpu_custom_call.1} parent=19 // pred_fallthru
          _
      $region20: #{tpu_custom_call.1} parent=5 // pred_fallthru
        _
      %p166 = scmp.le.s32.totalorder 1, %s15
      %p167 = scmp.lt.s32.totalorder %s15, 3
      %p168 = pnand %p166, %p167
      %p169 = pneg %p168
      // Predicated region
      $region25: #{tpu_custom_call.1} parent=5 // pred_check
        _
      $region26: #{tpu_custom_call.1} parent=5 // pred_check_branch
        %171 = sbr.rel (%p168) target = $region28
      $region27: #{tpu_custom_call.1} parent=5 // pred_region
        %s172 = ssub.s32 %s15, 1
        %s173 = sand.u32 %s28, 1
        %s174 = scalar_lea.sflag [#allocation3], %s173
        %s175 = sand.u32 %s28, 1
        %s176 = smul.addr %s175, 16
        %s177 = scalar_lea.vmem [#allocation2], %s176
        // Predicated region
        $region29: #{tpu_custom_call.1} parent=27 // pred_check
          %p178 = pneg %p41
        $region30: #{tpu_custom_call.1} parent=27 // pred_check_branch
          %180 = sbr.rel (%p178) target = $region32
        $region31: #{tpu_custom_call.1} parent=27 // pred_region
          %181 = dma.done %s174, 256
        $region32: #{tpu_custom_call.1} parent=27 // pred_fallthru
          _
        // Predicated region
        $region33: #{tpu_custom_call.1} parent=27 // pred_check
          %p182 = pneg %p62
        $region34: #{tpu_custom_call.1} parent=27 // pred_check_branch
          %184 = sbr.rel (%p182) target = $region36
        $region35: #{tpu_custom_call.1} parent=27 // pred_region
          %185 = dma.done [#allocation6], 6912
        $region36: #{tpu_custom_call.1} parent=27 // pred_fallthru
          _
        %s186 = sand.u32 %s28, 1
        %s187 = scalar_lea.sflag [#allocation3], %s186
        %s188 = sand.u32 %s28, 1
        %s189 = smul.addr %s188, 16
        %s190 = scalar_lea.vmem [#allocation2], %s189
        %p191 = pneg %p41
        %p192 = pneg %p38
        %p193 = pneg %p62
        %p194 = pneg %p59
        %p195 = pneg %p88
        %p196 = pneg %p85
        %s197 = sand.u32 %s75, 1
        %s198 = scalar_lea.sflag [#allocation4], %s197
        %s199 = sand.u32 %s75, 1
        %s200 = smul.addr %s199, 16
        %s201 = scalar_lea.vmem [#allocation7], %s200
        %s202 = smul.u32 2, %s20
        %s203 = smul.u32 2, %s20
        %v205 = vld [vmem:[%s177] sm:$0xf]
        %v206 = vld [vmem:[%s177 + $0x4] sm:$0xf]
        %v207 = vunpack.c.l.bf16 %v205
        %v208 = vunpack.c.l.bf16 %v206
        %s209 = scalar_lea.vmem %s177, 8 [#allocation2]
        %v210 = vld [vmem:[%s209] sm:$0xf]
        %v211 = vld [vmem:[%s209 + $0x4] sm:$0xf]
        %v212 = vunpack.c.l.bf16 %v210
        %v213 = vunpack.c.l.bf16 %v211
        %215 = vset.pattern.permute.xlu0 127
        %216 = vperm.xlu0 %215, %v207
        %v217 = vpop.permute.xlu0 %216
        %220 = vset.pattern.permute.xlu0 127
        %221 = vperm.xlu0 %220, %v208
        %v222 = vpop.permute.xlu0 %221
        %v224 = vmul.f32 %v217, %v207
        %v225 = vmul.f32 %v222, %v208
        %v226 = vsub.f32 1.0, %v207
        %v227 = vsub.f32 1.0, %v208
        %229 = vset.pattern.permute.xlu0 127
        %230 = vperm.xlu0 %229, %v226
        %v231 = vpop.permute.xlu0 %230
        %234 = vset.pattern.permute.xlu0 127
        %235 = vperm.xlu0 %234, %v227
        %v236 = vpop.permute.xlu0 %235
        %v238 = vmul.f32 %v231, %v212
        %v239 = vmul.f32 %v236, %v213
        %v240 = vadd.f32 %v224, %v238
        %v241 = vadd.f32 %v225, %v239
        %v242 = vld [vmem:[#allocation5] sm:$0xf]
        %v243 = vld [vmem:[#allocation5 + $0x4] sm:$0xf]
        %v244 = vld [vmem:[#allocation5 + $0x8] sm:$0xf]
        %v245 = vld [vmem:[#allocation5 + $0xc] sm:$0xf]
        %v246 = vld [vmem:[#allocation5 + $0x10] sm:$0xf]
        %v247 = vld [vmem:[#allocation5 + $0x14] sm:$0xf]
        %v248 = vld [vmem:[#allocation5 + $0x18] sm:$0xf]
        %v249 = vld [vmem:[#allocation5 + $0x1c] sm:$0xf]
        %v250 = vld [vmem:[#allocation5 + $0x20] sm:$0xf]
        %v251 = vld [vmem:[#allocation5 + $0x24] sm:$0xf]
        %v252 = vld [vmem:[#allocation5 + $0x28] sm:$0xf]
        %v253 = vld [vmem:[#allocation5 + $0x2c] sm:$0xf]
        %v254 = vld [vmem:[#allocation5 + $0x30] sm:$0xf]
        %v255 = vld [vmem:[#allocation5 + $0x34] sm:$0xf]
        %v256 = vld [vmem:[#allocation5 + $0x38] sm:$0xf]
        %v257 = vld [vmem:[#allocation5 + $0x3c] sm:$0xf]
        %v258 = vld [vmem:[#allocation5 + $0x40] sm:$0x1]
        %v259 = vunpack.c.l.bf16 %v258
        %v260 = vpack.c.bf16 %v241, %v240
        %v261 = vlaneseq
        %v262 = vshrl.u32 %v261, 7
        %v263 = vsub.s32 0, %v262
        %v264 = vrot.slane %v259, %v263
        %v281 = vunpack.c.l.b16 %v242
        %v282 = vunpack.c.l.b16 %v243
        %v283 = vunpack.c.l.b16 %v244
        %v284 = vunpack.c.l.b16 %v245
        %v285 = vunpack.c.l.b16 %v246
        %v286 = vunpack.c.l.b16 %v247
        %v287 = vunpack.c.l.b16 %v248
        %v288 = vunpack.c.l.b16 %v249
        %v289 = vunpack.c.l.b16 %v250
        %v290 = vunpack.c.l.b16 %v251
        %v291 = vunpack.c.l.b16 %v252
        %v292 = vunpack.c.l.b16 %v253
        %v293 = vunpack.c.l.b16 %v254
        %v294 = vunpack.c.l.b16 %v255
        %v295 = vunpack.c.l.b16 %v256
        %v296 = vunpack.c.l.b16 %v257
        %v297 = vpack.c.b16 %v282, %v281
        %v298 = vpack.c.b16 %v284, %v283
        %v299 = vpack.c.b16 %v286, %v285
        %v300 = vpack.c.b16 %v288, %v287
        %v301 = vpack.c.b16 %v290, %v289
        %v302 = vpack.c.b16 %v292, %v291
        %v303 = vpack.c.b16 %v294, %v293
        %v304 = vpack.c.b16 %v296, %v295
        %313 = vmatprep.subr.bf16.mxu0 0
        %314 = vmatpush1.bf16.msra.mxu0 %v297
        %315 = vmatprep.subr.bf16.mxu0 0
        %316 = vmatpush1.bf16.msra.mxu0 %v298
        %317 = vmatprep.subr.bf16.mxu0 0
        %318 = vmatpush1.bf16.msra.mxu0 %v299
        %319 = vmatprep.subr.bf16.mxu0 0
        %320 = vmatpush1.bf16.msra.mxu0 %v300
        %321 = vmatprep.subr.bf16.mxu0 0
        %322 = vmatpush1.bf16.msra.mxu0 %v301
        %323 = vmatprep.subr.bf16.mxu0 0
        %324 = vmatpush1.bf16.msra.mxu0 %v302
        %325 = vmatprep.subr.bf16.mxu0 0
        %326 = vmatpush1.bf16.msra.mxu0 %v303
        %327 = vmatprep.subr.bf16.mxu0 0
        %328 = vmatpush1.bf16.msra.mxu0 %v304
        %329 = vmatprep.subr.bf16.mxu0 0
        %330 = vmatpush1.bf16.msra.mxu0 0
        %331 = vmatprep.subr.bf16.mxu0 0
        %332 = vmatpush1.bf16.msra.mxu0 0
        %333 = vmatprep.subr.bf16.mxu0 0
        %334 = vmatpush1.bf16.msra.mxu0 0
        %335 = vmatprep.subr.bf16.mxu0 0
        %336 = vmatpush1.bf16.msra.mxu0 0
        %337 = vmatprep.subr.bf16.mxu0 0
        %338 = vmatpush1.bf16.msra.mxu0 0
        %339 = vmatprep.subr.bf16.mxu0 0
        %340 = vmatpush1.bf16.msra.mxu0 0
        %341 = vmatprep.subr.bf16.mxu0 0
        %342 = vmatpush1.bf16.msra.mxu0 0
        %343 = vmatprep.subr.bf16.mxu0 0
        %344 = vmatpush1.bf16.msra.mxu0 0
        %345 = vmatprep.mubr.bf16.mxu0 0
        %346 = vmatmul.mubr.bf16.gmra.mrb[0].mxu0 %v260
        %v347 = vpop.f32.mrb[0].mxu0
        %v348 = vadd.f32 %v264, %v347
        %v349 = vpop.f32.mrb[0].mxu0
        %v350 = vpop.f32.mrb[0].mxu0
        %v351 = vadd.f32 %v264, %v350
        %v352 = vpop.f32.mrb[0].mxu0
        %353 = vdwg.mxu0
        %v354 = vmul.f32 %v348, 0.5
        %v355 = vmul.f32 %v351, 0.5
        %v356 = vmul.f32 %v348, 0.044715
        %v357 = vmul.f32 %v351, 0.044715
        %v358 = vmul.f32 %v356, %v348
        %v359 = vmul.f32 %v357, %v351
        %v360 = vmul.f32 %v358, %v348
        %v361 = vmul.f32 %v359, %v351
        %v362 = vadd.f32 %v348, %v360
        %v363 = vadd.f32 %v351, %v361
        %v364 = vmul.f32 %v362, 0.7978846
        %v365 = vmul.f32 %v363, 0.7978846
        %v366 = vtanh.pop %v364
        %v367 = vtanh.pop %v365
        %v368 = vadd.f32 %v366, 1.0
        %v369 = vadd.f32 %v367, 1.0
        %v370 = vmul.f32 %v354, %v368
        %v371 = vmul.f32 %v355, %v369
        %v372 = vld [vmem:[#allocation5 + $0x48] sm:$0xf]
        %v373 = vld [vmem:[#allocation5 + $0x4c] sm:$0xf]
        %v374 = vld [vmem:[#allocation5 + $0x50] sm:$0xf]
        %v375 = vld [vmem:[#allocation5 + $0x54] sm:$0xf]
        %v376 = vld [vmem:[#allocation5 + $0x58] sm:$0xf]
        %v377 = vld [vmem:[#allocation5 + $0x5c] sm:$0xf]
        %v378 = vld [vmem:[#allocation5 + $0x60] sm:$0xf]
        %v379 = vld [vmem:[#allocation5 + $0x64] sm:$0xf]
        %v380 = vld [vmem:[#allocation5 + $0x68] sm:$0xf]
        %v381 = vld [vmem:[#allocation5 + $0x6c] sm:$0xf]
        %v382 = vld [vmem:[#allocation5 + $0x70] sm:$0xf]
        %v383 = vld [vmem:[#allocation5 + $0x74] sm:$0xf]
        %v384 = vld [vmem:[#allocation5 + $0x78] sm:$0xf]
        %v385 = vld [vmem:[#allocation5 + $0x7c] sm:$0xf]
        %v386 = vld [vmem:[#allocation5 + $0x80] sm:$0xf]
        %v387 = vld [vmem:[#allocation5 + $0x84] sm:$0xf]
        %v388 = vld [vmem:[#allocation5 + $0x88] sm:$0x1]
        %v389 = vunpack.c.l.bf16 %v388
        %v390 = vpack.c.bf16 %v371, %v370
        %v391 = vlaneseq
        %v392 = vshrl.u32 %v391, 7
        %v393 = vsub.s32 0, %v392
        %v394 = vrot.slane %v389, %v393
        %v411 = vunpack.c.l.b16 %v372
        %v412 = vunpack.c.l.b16 %v373
        %v413 = vunpack.c.l.b16 %v374
        %v414 = vunpack.c.l.b16 %v375
        %v415 = vunpack.c.l.b16 %v376
        %v416 = vunpack.c.l.b16 %v377
        %v417 = vunpack.c.l.b16 %v378
        %v418 = vunpack.c.l.b16 %v379
        %v419 = vunpack.c.l.b16 %v380
        %v420 = vunpack.c.l.b16 %v381
        %v421 = vunpack.c.l.b16 %v382
        %v422 = vunpack.c.l.b16 %v383
        %v423 = vunpack.c.l.b16 %v384
        %v424 = vunpack.c.l.b16 %v385
        %v425 = vunpack.c.l.b16 %v386
        %v426 = vunpack.c.l.b16 %v387
        %v427 = vpack.c.b16 %v412, %v411
        %v428 = vpack.c.b16 %v414, %v413
        %v429 = vpack.c.b16 %v416, %v415
        %v430 = vpack.c.b16 %v418, %v417
        %v431 = vpack.c.b16 %v420, %v419
        %v432 = vpack.c.b16 %v422, %v421
        %v433 = vpack.c.b16 %v424, %v423
        %v434 = vpack.c.b16 %v426, %v425
        %443 = vmatprep.subr.bf16.mxu0 0
        %444 = vmatpush1.bf16.msra.mxu0 %v427
        %445 = vmatprep.subr.bf16.mxu0 0
        %446 = vmatpush1.bf16.msra.mxu0 %v428
        %447 = vmatprep.subr.bf16.mxu0 0
        %448 = vmatpush1.bf16.msra.mxu0 %v429
        %449 = vmatprep.subr.bf16.mxu0 0
        %450 = vmatpush1.bf16.msra.mxu0 %v430
        %451 = vmatprep.subr.bf16.mxu0 0
        %452 = vmatpush1.bf16.msra.mxu0 %v431
        %453 = vmatprep.subr.bf16.mxu0 0
        %454 = vmatpush1.bf16.msra.mxu0 %v432
        %455 = vmatprep.subr.bf16.mxu0 0
        %456 = vmatpush1.bf16.msra.mxu0 %v433
        %457 = vmatprep.subr.bf16.mxu0 0
        %458 = vmatpush1.bf16.msra.mxu0 %v434
        %459 = vmatprep.subr.bf16.mxu0 0
        %460 = vmatpush1.bf16.msra.mxu0 0
        %461 = vmatprep.subr.bf16.mxu0 0
        %462 = vmatpush1.bf16.msra.mxu0 0
        %463 = vmatprep.subr.bf16.mxu0 0
        %464 = vmatpush1.bf16.msra.mxu0 0
        %465 = vmatprep.subr.bf16.mxu0 0
        %466 = vmatpush1.bf16.msra.mxu0 0
        %467 = vmatprep.subr.bf16.mxu0 0
        %468 = vmatpush1.bf16.msra.mxu0 0
        %469 = vmatprep.subr.bf16.mxu0 0
        %470 = vmatpush1.bf16.msra.mxu0 0
        %471 = vmatprep.subr.bf16.mxu0 0
        %472 = vmatpush1.bf16.msra.mxu0 0
        %473 = vmatprep.subr.bf16.mxu0 0
        %474 = vmatpush1.bf16.msra.mxu0 0
        %475 = vmatprep.mubr.bf16.mxu0 0
        %476 = vmatmul.mubr.bf16.gmra.mrb[0].mxu0 %v390
        %v477 = vpop.f32.mrb[0].mxu0
        %v478 = vadd.f32 %v394, %v477
        %v479 = vpop.f32.mrb[0].mxu0
        %v480 = vpop.f32.mrb[0].mxu0
        %v481 = vadd.f32 %v394, %v480
        %v482 = vpop.f32.mrb[0].mxu0
        %483 = vdwg.mxu0
        %v484 = vmul.f32 %v478, 0.5
        %v485 = vmul.f32 %v481, 0.5
        %v486 = vmul.f32 %v478, 0.044715
        %v487 = vmul.f32 %v481, 0.044715
        %v488 = vmul.f32 %v486, %v478
        %v489 = vmul.f32 %v487, %v481
        %v490 = vmul.f32 %v488, %v478
        %v491 = vmul.f32 %v489, %v481
        %v492 = vadd.f32 %v478, %v490
        %v493 = vadd.f32 %v481, %v491
        %v494 = vmul.f32 %v492, 0.7978846
        %v495 = vmul.f32 %v493, 0.7978846
        %v496 = vtanh.pop %v494
        %v497 = vtanh.pop %v495
        %v498 = vadd.f32 %v496, 1.0
        %v499 = vadd.f32 %v497, 1.0
        %v500 = vmul.f32 %v484, %v498
        %v501 = vmul.f32 %v485, %v499
        %v502 = vld [vmem:[#allocation5 + $0x90] sm:$0xf]
        %v503 = vld [vmem:[#allocation5 + $0x94] sm:$0xf]
        %v504 = vld [vmem:[#allocation5 + $0x98] sm:$0xf]
        %v505 = vld [vmem:[#allocation5 + $0x9c] sm:$0xf]
        %v506 = vld [vmem:[#allocation5 + $0xa0] sm:$0xf]
        %v507 = vld [vmem:[#allocation5 + $0xa4] sm:$0xf]
        %v508 = vld [vmem:[#allocation5 + $0xa8] sm:$0xf]
        %v509 = vld [vmem:[#allocation5 + $0xac] sm:$0xf]
        %v510 = vld [vmem:[#allocation5 + $0xb0] sm:$0xf]
        %v511 = vld [vmem:[#allocation5 + $0xb4] sm:$0xf]
        %v512 = vld [vmem:[#allocation5 + $0xb8] sm:$0xf]
        %v513 = vld [vmem:[#allocation5 + $0xbc] sm:$0xf]
        %v514 = vld [vmem:[#allocation5 + $0xc0] sm:$0xf]
        %v515 = vld [vmem:[#allocation5 + $0xc4] sm:$0xf]
        %v516 = vld [vmem:[#allocation5 + $0xc8] sm:$0xf]
        %v517 = vld [vmem:[#allocation5 + $0xcc] sm:$0xf]
        %v518 = vld [vmem:[#allocation5 + $0xd0] sm:$0x1]
        %v519 = vunpack.c.l.bf16 %v518
        %v520 = vpack.c.bf16 %v501, %v500
        %v521 = vlaneseq
        %v522 = vshrl.u32 %v521, 7
        %v523 = vsub.s32 0, %v522
        %v524 = vrot.slane %v519, %v523
        %v541 = vunpack.c.l.b16 %v502
        %v542 = vunpack.c.l.b16 %v503
        %v543 = vunpack.c.l.b16 %v504
        %v544 = vunpack.c.l.b16 %v505
        %v545 = vunpack.c.l.b16 %v506
        %v546 = vunpack.c.l.b16 %v507
        %v547 = vunpack.c.l.b16 %v508
        %v548 = vunpack.c.l.b16 %v509
        %v549 = vunpack.c.l.b16 %v510
        %v550 = vunpack.c.l.b16 %v511
        %v551 = vunpack.c.l.b16 %v512
        %v552 = vunpack.c.l.b16 %v513
        %v553 = vunpack.c.l.b16 %v514
        %v554 = vunpack.c.l.b16 %v515
        %v555 = vunpack.c.l.b16 %v516
        %v556 = vunpack.c.l.b16 %v517
        %v557 = vpack.c.b16 %v542, %v541
        %v558 = vpack.c.b16 %v544, %v543
        %v559 = vpack.c.b16 %v546, %v545
        %v560 = vpack.c.b16 %v548, %v547
        %v561 = vpack.c.b16 %v550, %v549
        %v562 = vpack.c.b16 %v552, %v551
        %v563 = vpack.c.b16 %v554, %v553
        %v564 = vpack.c.b16 %v556, %v555
        %573 = vmatprep.subr.bf16.mxu0 0
        %574 = vmatpush1.bf16.msra.mxu0 %v557
        %575 = vmatprep.subr.bf16.mxu0 0
        %576 = vmatpush1.bf16.msra.mxu0 %v558
        %577 = vmatprep.subr.bf16.mxu0 0
        %578 = vmatpush1.bf16.msra.mxu0 %v559
        %579 = vmatprep.subr.bf16.mxu0 0
        %580 = vmatpush1.bf16.msra.mxu0 %v560
        %581 = vmatprep.subr.bf16.mxu0 0
        %582 = vmatpush1.bf16.msra.mxu0 %v561
        %583 = vmatprep.subr.bf16.mxu0 0
        %584 = vmatpush1.bf16.msra.mxu0 %v562
        %585 = vmatprep.subr.bf16.mxu0 0
        %586 = vmatpush1.bf16.msra.mxu0 %v563
        %587 = vmatprep.subr.bf16.mxu0 0
        %588 = vmatpush1.bf16.msra.mxu0 %v564
        %589 = vmatprep.subr.bf16.mxu0 0
        %590 = vmatpush1.bf16.msra.mxu0 0
        %591 = vmatprep.subr.bf16.mxu0 0
        %592 = vmatpush1.bf16.msra.mxu0 0
        %593 = vmatprep.subr.bf16.mxu0 0
        %594 = vmatpush1.bf16.msra.mxu0 0
        %595 = vmatprep.subr.bf16.mxu0 0
        %596 = vmatpush1.bf16.msra.mxu0 0
        %597 = vmatprep.subr.bf16.mxu0 0
        %598 = vmatpush1.bf16.msra.mxu0 0
        %599 = vmatprep.subr.bf16.mxu0 0
        %600 = vmatpush1.bf16.msra.mxu0 0
        %601 = vmatprep.subr.bf16.mxu0 0
        %602 = vmatpush1.bf16.msra.mxu0 0
        %603 = vmatprep.subr.bf16.mxu0 0
        %604 = vmatpush1.bf16.msra.mxu0 0
        %605 = vmatprep.mubr.bf16.mxu0 0
        %606 = vmatmul.mubr.bf16.gmra.mrb[0].mxu0 %v520
        %v607 = vpop.f32.mrb[0].mxu0
        %v608 = vadd.f32 %v524, %v607
        %v609 = vpop.f32.mrb[0].mxu0
        %v610 = vpop.f32.mrb[0].mxu0
        %v611 = vadd.f32 %v524, %v610
        %v612 = vpop.f32.mrb[0].mxu0
        %613 = vdwg.mxu0
        %v614 = vmul.f32 %v608, 0.5
        %v615 = vmul.f32 %v611, 0.5
        %v616 = vmul.f32 %v608, 0.044715
        %v617 = vmul.f32 %v611, 0.044715
        %v618 = vmul.f32 %v616, %v608
        %v619 = vmul.f32 %v617, %v611
        %v620 = vmul.f32 %v618, %v608
        %v621 = vmul.f32 %v619, %v611
        %v622 = vadd.f32 %v608, %v620
        %v623 = vadd.f32 %v611, %v621
        %v624 = vmul.f32 %v622, 0.7978846
        %v625 = vmul.f32 %v623, 0.7978846
        %v626 = vtanh.pop %v624
        %v627 = vtanh.pop %v625
        %v628 = vadd.f32 %v626, 1.0
        %v629 = vadd.f32 %v627, 1.0
        %v630 = vmul.f32 %v614, %v628
        %v631 = vmul.f32 %v615, %v629
        %v632 = vld [vmem:[#allocation5 + $0xd8] sm:$0xf]
        %v633 = vld [vmem:[#allocation5 + $0xdc] sm:$0xf]
        %v634 = vld [vmem:[#allocation5 + $0xe0] sm:$0xf]
        %v635 = vld [vmem:[#allocation5 + $0xe4] sm:$0xf]
        %v636 = vld [vmem:[#allocation5 + $0xe8] sm:$0xf]
        %v637 = vld [vmem:[#allocation5 + $0xec] sm:$0xf]
        %v638 = vld [vmem:[#allocation5 + $0xf0] sm:$0xf]
        %v639 = vld [vmem:[#allocation5 + $0xf4] sm:$0xf]
        %v640 = vld [vmem:[#allocation5 + $0xf8] sm:$0xf]
        %v641 = vld [vmem:[#allocation5 + $0xfc] sm:$0xf]
        %v642 = vld [vmem:[#allocation5 + $0x100] sm:$0xf]
        %v643 = vld [vmem:[#allocation5 + $0x104] sm:$0xf]
        %v644 = vld [vmem:[#allocation5 + $0x108] sm:$0xf]
        %v645 = vld [vmem:[#allocation5 + $0x10c] sm:$0xf]
        %v646 = vld [vmem:[#allocation5 + $0x110] sm:$0xf]
        %v647 = vld [vmem:[#allocation5 + $0x114] sm:$0xf]
        %v648 = vld [vmem:[#allocation5 + $0x118] sm:$0x1]
        %v649 = vunpack.c.l.bf16 %v648
        %v650 = vpack.c.bf16 %v631, %v630
        %v651 = vlaneseq
        %v652 = vshrl.u32 %v651, 7
        %v653 = vsub.s32 0, %v652
        %v654 = vrot.slane %v649, %v653
        %v671 = vunpack.c.l.b16 %v632
        %v672 = vunpack.c.l.b16 %v633
        %v673 = vunpack.c.l.b16 %v634
        %v674 = vunpack.c.l.b16 %v635
        %v675 = vunpack.c.l.b16 %v636
        %v676 = vunpack.c.l.b16 %v637
        %v677 = vunpack.c.l.b16 %v638
        %v678 = vunpack.c.l.b16 %v639
        %v679 = vunpack.c.l.b16 %v640
        %v680 = vunpack.c.l.b16 %v641
        %v681 = vunpack.c.l.b16 %v642
        %v682 = vunpack.c.l.b16 %v643
        %v683 = vunpack.c.l.b16 %v644
        %v684 = vunpack.c.l.b16 %v645
        %v685 = vunpack.c.l.b16 %v646
        %v686 = vunpack.c.l.b16 %v647
        %v687 = vpack.c.b16 %v672, %v671
        %v688 = vpack.c.b16 %v674, %v673
        %v689 = vpack.c.b16 %v676, %v675
        %v690 = vpack.c.b16 %v678, %v677
        %v691 = vpack.c.b16 %v680, %v679
        %v692 = vpack.c.b16 %v682, %v681
        %v693 = vpack.c.b16 %v684, %v683
        %v694 = vpack.c.b16 %v686, %v685
        %703 = vmatprep.subr.bf16.mxu0 0
        %704 = vmatpush1.bf16.msra.mxu0 %v687
        %705 = vmatprep.subr.bf16.mxu0 0
        %706 = vmatpush1.bf16.msra.mxu0 %v688
        %707 = vmatprep.subr.bf16.mxu0 0
        %708 = vmatpush1.bf16.msra.mxu0 %v689
        %709 = vmatprep.subr.bf16.mxu0 0
        %710 = vmatpush1.bf16.msra.mxu0 %v690
        %711 = vmatprep.subr.bf16.mxu0 0
        %712 = vmatpush1.bf16.msra.mxu0 %v691
        %713 = vmatprep.subr.bf16.mxu0 0
        %714 = vmatpush1.bf16.msra.mxu0 %v692
        %715 = vmatprep.subr.bf16.mxu0 0
        %716 = vmatpush1.bf16.msra.mxu0 %v693
        %717 = vmatprep.subr.bf16.mxu0 0
        %718 = vmatpush1.bf16.msra.mxu0 %v694
        %719 = vmatprep.subr.bf16.mxu0 0
        %720 = vmatpush1.bf16.msra.mxu0 0
        %721 = vmatprep.subr.bf16.mxu0 0
        %722 = vmatpush1.bf16.msra.mxu0 0
        %723 = vmatprep.subr.bf16.mxu0 0
        %724 = vmatpush1.bf16.msra.mxu0 0
        %725 = vmatprep.subr.bf16.mxu0 0
        %726 = vmatpush1.bf16.msra.mxu0 0
        %727 = vmatprep.subr.bf16.mxu0 0
        %728 = vmatpush1.bf16.msra.mxu0 0
        %729 = vmatprep.subr.bf16.mxu0 0
        %730 = vmatpush1.bf16.msra.mxu0 0
        %731 = vmatprep.subr.bf16.mxu0 0
        %732 = vmatpush1.bf16.msra.mxu0 0
        %733 = vmatprep.subr.bf16.mxu0 0
        %734 = vmatpush1.bf16.msra.mxu0 0
        %735 = vmatprep.mubr.bf16.mxu0 0
        %736 = vmatmul.mubr.bf16.gmra.mrb[0].mxu0 %v650
        %v737 = vpop.f32.mrb[0].mxu0
        %v738 = vadd.f32 %v654, %v737
        %v739 = vpop.f32.mrb[0].mxu0
        %v740 = vpop.f32.mrb[0].mxu0
        %v741 = vadd.f32 %v654, %v740
        %v742 = vpop.f32.mrb[0].mxu0
        %743 = vdwg.mxu0
        %v744 = vmul.f32 %v738, 0.5
        %v745 = vmul.f32 %v741, 0.5
        %v746 = vmul.f32 %v738, 0.044715
        %v747 = vmul.f32 %v741, 0.044715
        %v748 = vmul.f32 %v746, %v738
        %v749 = vmul.f32 %v747, %v741
        %v750 = vmul.f32 %v748, %v738
        %v751 = vmul.f32 %v749, %v741
        %v752 = vadd.f32 %v738, %v750
        %v753 = vadd.f32 %v741, %v751
        %v754 = vmul.f32 %v752, 0.7978846
        %v755 = vmul.f32 %v753, 0.7978846
        %v756 = vtanh.pop %v754
        %v757 = vtanh.pop %v755
        %v758 = vadd.f32 %v756, 1.0
        %v759 = vadd.f32 %v757, 1.0
        %v760 = vmul.f32 %v744, %v758
        %v761 = vmul.f32 %v745, %v759
        %v762 = vld [vmem:[#allocation5 + $0x120] sm:$0xf]
        %v763 = vld [vmem:[#allocation5 + $0x124] sm:$0xf]
        %v764 = vld [vmem:[#allocation5 + $0x128] sm:$0xf]
        %v765 = vld [vmem:[#allocation5 + $0x12c] sm:$0xf]
        %v766 = vld [vmem:[#allocation5 + $0x130] sm:$0xf]
        %v767 = vld [vmem:[#allocation5 + $0x134] sm:$0xf]
        %v768 = vld [vmem:[#allocation5 + $0x138] sm:$0xf]
        %v769 = vld [vmem:[#allocation5 + $0x13c] sm:$0xf]
        %v770 = vld [vmem:[#allocation5 + $0x140] sm:$0xf]
        %v771 = vld [vmem:[#allocation5 + $0x144] sm:$0xf]
        %v772 = vld [vmem:[#allocation5 + $0x148] sm:$0xf]
        %v773 = vld [vmem:[#allocation5 + $0x14c] sm:$0xf]
        %v774 = vld [vmem:[#allocation5 + $0x150] sm:$0xf]
        %v775 = vld [vmem:[#allocation5 + $0x154] sm:$0xf]
        %v776 = vld [vmem:[#allocation5 + $0x158] sm:$0xf]
        %v777 = vld [vmem:[#allocation5 + $0x15c] sm:$0xf]
        %v778 = vld [vmem:[#allocation5 + $0x160] sm:$0x1]
        %v779 = vunpack.c.l.bf16 %v778
        %v780 = vpack.c.bf16 %v761, %v760
        %v781 = vlaneseq
        %v782 = vshrl.u32 %v781, 7
        %v783 = vsub.s32 0, %v782
        %v784 = vrot.slane %v779, %v783
        %v801 = vunpack.c.l.b16 %v762
        %v802 = vunpack.c.l.b16 %v763
        %v803 = vunpack.c.l.b16 %v764
        %v804 = vunpack.c.l.b16 %v765
        %v805 = vunpack.c.l.b16 %v766
        %v806 = vunpack.c.l.b16 %v767
        %v807 = vunpack.c.l.b16 %v768
        %v808 = vunpack.c.l.b16 %v769
        %v809 = vunpack.c.l.b16 %v770
        %v810 = vunpack.c.l.b16 %v771
        %v811 = vunpack.c.l.b16 %v772
        %v812 = vunpack.c.l.b16 %v773
        %v813 = vunpack.c.l.b16 %v774
        %v814 = vunpack.c.l.b16 %v775
        %v815 = vunpack.c.l.b16 %v776
        %v816 = vunpack.c.l.b16 %v777
        %v817 = vpack.c.b16 %v802, %v801
        %v818 = vpack.c.b16 %v804, %v803
        %v819 = vpack.c.b16 %v806, %v805
        %v820 = vpack.c.b16 %v808, %v807
        %v821 = vpack.c.b16 %v810, %v809
        %v822 = vpack.c.b16 %v812, %v811
        %v823 = vpack.c.b16 %v814, %v813
        %v824 = vpack.c.b16 %v816, %v815
        %833 = vmatprep.subr.bf16.mxu0 0
        %834 = vmatpush1.bf16.msra.mxu0 %v817
        %835 = vmatprep.subr.bf16.mxu0 0
        %836 = vmatpush1.bf16.msra.mxu0 %v818
        %837 = vmatprep.subr.bf16.mxu0 0
        %838 = vmatpush1.bf16.msra.mxu0 %v819
        %839 = vmatprep.subr.bf16.mxu0 0
        %840 = vmatpush1.bf16.msra.mxu0 %v820
        %841 = vmatprep.subr.bf16.mxu0 0
        %842 = vmatpush1.bf16.msra.mxu0 %v821
        %843 = vmatprep.subr.bf16.mxu0 0
        %844 = vmatpush1.bf16.msra.mxu0 %v822
        %845 = vmatprep.subr.bf16.mxu0 0
        %846 = vmatpush1.bf16.msra.mxu0 %v823
        %847 = vmatprep.subr.bf16.mxu0 0
        %848 = vmatpush1.bf16.msra.mxu0 %v824
        %849 = vmatprep.subr.bf16.mxu0 0
        %850 = vmatpush1.bf16.msra.mxu0 0
        %851 = vmatprep.subr.bf16.mxu0 0
        %852 = vmatpush1.bf16.msra.mxu0 0
        %853 = vmatprep.subr.bf16.mxu0 0
        %854 = vmatpush1.bf16.msra.mxu0 0
        %855 = vmatprep.subr.bf16.mxu0 0
        %856 = vmatpush1.bf16.msra.mxu0 0
        %857 = vmatprep.subr.bf16.mxu0 0
        %858 = vmatpush1.bf16.msra.mxu0 0
        %859 = vmatprep.subr.bf16.mxu0 0
        %860 = vmatpush1.bf16.msra.mxu0 0
        %861 = vmatprep.subr.bf16.mxu0 0
        %862 = vmatpush1.bf16.msra.mxu0 0
        %863 = vmatprep.subr.bf16.mxu0 0
        %864 = vmatpush1.bf16.msra.mxu0 0
        %865 = vmatprep.mubr.bf16.mxu0 0
        %866 = vmatmul.mubr.bf16.gmra.mrb[0].mxu0 %v780
        %v867 = vpop.f32.mrb[0].mxu0
        %v868 = vadd.f32 %v784, %v867
        %v869 = vpop.f32.mrb[0].mxu0
        %v870 = vpop.f32.mrb[0].mxu0
        %v871 = vadd.f32 %v784, %v870
        %v872 = vpop.f32.mrb[0].mxu0
        %873 = vdwg.mxu0
        %v874 = vmul.f32 %v868, 0.5
        %v875 = vmul.f32 %v871, 0.5
        %v876 = vmul.f32 %v868, 0.044715
        %v877 = vmul.f32 %v871, 0.044715
        %v878 = vmul.f32 %v876, %v868
        %v879 = vmul.f32 %v877, %v871
        %v880 = vmul.f32 %v878, %v868
        %v881 = vmul.f32 %v879, %v871
        %v882 = vadd.f32 %v868, %v880
        %v883 = vadd.f32 %v871, %v881
        %v884 = vmul.f32 %v882, 0.7978846
        %v885 = vmul.f32 %v883, 0.7978846
        %v886 = vtanh.pop %v884
        %v887 = vtanh.pop %v885
        %v888 = vadd.f32 %v886, 1.0
        %v889 = vadd.f32 %v887, 1.0
        %v890 = vmul.f32 %v874, %v888
        %v891 = vmul.f32 %v875, %v889
        %v892 = vld [vmem:[#allocation5 + $0x168] sm:$0xf]
        %v893 = vld [vmem:[#allocation5 + $0x16c] sm:$0xf]
        %v894 = vld [vmem:[#allocation5 + $0x170] sm:$0xf]
        %v895 = vld [vmem:[#allocation5 + $0x174] sm:$0xf]
        %v896 = vld [vmem:[#allocation5 + $0x178] sm:$0xf]
        %v897 = vld [vmem:[#allocation5 + $0x17c] sm:$0xf]
        %v898 = vld [vmem:[#allocation5 + $0x180] sm:$0xf]
        %v899 = vld [vmem:[#allocation5 + $0x184] sm:$0xf]
        %v900 = vld [vmem:[#allocation5 + $0x188] sm:$0xf]
        %v901 = vld [vmem:[#allocation5 + $0x18c] sm:$0xf]
        %v902 = vld [vmem:[#allocation5 + $0x190] sm:$0xf]
        %v903 = vld [vmem:[#allocation5 + $0x194] sm:$0xf]
        %v904 = vld [vmem:[#allocation5 + $0x198] sm:$0xf]
        %v905 = vld [vmem:[#allocation5 + $0x19c] sm:$0xf]
        %v906 = vld [vmem:[#allocation5 + $0x1a0] sm:$0xf]
        %v907 = vld [vmem:[#allocation5 + $0x1a4] sm:$0xf]
        %v908 = vld [vmem:[#allocation5 + $0x1a8] sm:$0x1]
        %v909 = vunpack.c.l.bf16 %v908
        %v910 = vpack.c.bf16 %v891, %v890
        %v911 = vlaneseq
        %v912 = vshrl.u32 %v911, 7
        %v913 = vsub.s32 0, %v912
        %v914 = vrot.slane %v909, %v913
        %v931 = vunpack.c.l.b16 %v892
        %v932 = vunpack.c.l.b16 %v893
        %v933 = vunpack.c.l.b16 %v894
        %v934 = vunpack.c.l.b16 %v895
        %v935 = vunpack.c.l.b16 %v896
        %v936 = vunpack.c.l.b16 %v897
        %v937 = vunpack.c.l.b16 %v898
        %v938 = vunpack.c.l.b16 %v899
        %v939 = vunpack.c.l.b16 %v900
        %v940 = vunpack.c.l.b16 %v901
        %v941 = vunpack.c.l.b16 %v902
        %v942 = vunpack.c.l.b16 %v903
        %v943 = vunpack.c.l.b16 %v904
        %v944 = vunpack.c.l.b16 %v905
        %v945 = vunpack.c.l.b16 %v906
        %v946 = vunpack.c.l.b16 %v907
        %v947 = vpack.c.b16 %v932, %v931
        %v948 = vpack.c.b16 %v934, %v933
        %v949 = vpack.c.b16 %v936, %v935
        %v950 = vpack.c.b16 %v938, %v937
        %v951 = vpack.c.b16 %v940, %v939
        %v952 = vpack.c.b16 %v942, %v941
        %v953 = vpack.c.b16 %v944, %v943
        %v954 = vpack.c.b16 %v946, %v945
        %963 = vmatprep.subr.bf16.mxu0 0
        %964 = vmatpush1.bf16.msra.mxu0 %v947
        %965 = vmatprep.subr.bf16.mxu0 0
        %966 = vmatpush1.bf16.msra.mxu0 %v948
        %967 = vmatprep.subr.bf16.mxu0 0
        %968 = vmatpush1.bf16.msra.mxu0 %v949
        %969 = vmatprep.subr.bf16.mxu0 0
        %970 = vmatpush1.bf16.msra.mxu0 %v950
        %971 = vmatprep.subr.bf16.mxu0 0
        %972 = vmatpush1.bf16.msra.mxu0 %v951
        %973 = vmatprep.subr.bf16.mxu0 0
        %974 = vmatpush1.bf16.msra.mxu0 %v952
        %975 = vmatprep.subr.bf16.mxu0 0
        %976 = vmatpush1.bf16.msra.mxu0 %v953
        %977 = vmatprep.subr.bf16.mxu0 0
        %978 = vmatpush1.bf16.msra.mxu0 %v954
        %979 = vmatprep.subr.bf16.mxu0 0
        %980 = vmatpush1.bf16.msra.mxu0 0
        %981 = vmatprep.subr.bf16.mxu0 0
        %982 = vmatpush1.bf16.msra.mxu0 0
        %983 = vmatprep.subr.bf16.mxu0 0
        %984 = vmatpush1.bf16.msra.mxu0 0
        %985 = vmatprep.subr.bf16.mxu0 0
        %986 = vmatpush1.bf16.msra.mxu0 0
        %987 = vmatprep.subr.bf16.mxu0 0
        %988 = vmatpush1.bf16.msra.mxu0 0
        %989 = vmatprep.subr.bf16.mxu0 0
        %990 = vmatpush1.bf16.msra.mxu0 0
        %991 = vmatprep.subr.bf16.mxu0 0
        %992 = vmatpush1.bf16.msra.mxu0 0
        %993 = vmatprep.subr.bf16.mxu0 0
        %994 = vmatpush1.bf16.msra.mxu0 0
        %995 = vmatprep.mubr.bf16.mxu0 0
        %996 = vmatmul.mubr.bf16.gmra.mrb[0].mxu0 %v910
        %v997 = vpop.f32.mrb[0].mxu0
        %v998 = vadd.f32 %v914, %v997
        %v999 = vpop.f32.mrb[0].mxu0
        %v1000 = vpop.f32.mrb[0].mxu0
        %v1001 = vadd.f32 %v914, %v1000
        %v1002 = vpop.f32.mrb[0].mxu0
        %1003 = vdwg.mxu0
        %v1004 = vlaneseq
        %v1005 = vand.u32 %v1004, 127
        %vm1006 = vcmp.lt.s32.totalorder %v1005, 27
        %v1007 = vsel %vm1006, %v240, 0.0
        %v1008 = vsel %vm1006, %v241, 0.0
        %vm1009 = vcmp.eq.s32.totalorder %v1005, 37
        %v1010 = vxor.u32 %v998, 2147483648
        %v1011 = vxor.u32 %v1001, 2147483648
        %v1012 = vmul.f32 %v1010, 1.442695
        %v1013 = vpow.pop %v1012
        %v1014 = vmul.f32 %v1011, 1.442695
        %v1015 = vpow.pop %v1014
        %v1016 = vadd.f32 %v1013, 1.0
        %v1017 = vadd.f32 %v1015, 1.0
        %v1018 = vrcp.pop %v1016
        %v1019 = vmul.f32 1.0, %v1018
        %v1020 = vrcp.pop %v1017
        %v1021 = vmul.f32 1.0, %v1020
        %v1022 = vsel %vm1009, %v1019, %v998
        %v1023 = vsel %vm1009, %v1021, %v1001
        %v1024 = vadd.f32 %v1007, %v760
        %v1025 = vadd.f32 %v1008, %v761
        %v1026 = vadd.f32 %v1024, %v1022
        %v1027 = vadd.f32 %v1025, %v1023
        %1028 = vst [vmem:[%s201] sm:$0xff] %v1026
        %1029 = vst [vmem:[%s201 + $0x8] sm:$0xff] %v1027
        %s1030 = sand.u32 %s75, 1
        %s1031 = scalar_lea.sflag [#allocation4], %s1030
        %s1032 = sand.u32 %s75, 1
        %s1033 = smul.addr %s1032, 16
        %s1034 = scalar_lea.vmem [#allocation7], %s1033
        // Predicated region
        $region37: #{tpu_custom_call.1} parent=27 // pred_check
          %p1035 = pneg %p85
        $region38: #{tpu_custom_call.1} parent=27 // pred_check_branch
          %1037 = sbr.rel (%p1035) target = $region40
        $region39: #{tpu_custom_call.1} parent=27 // pred_region
          %s1038 = smul.u32 2, %s20
          %s1040 = ssub.s32 256, 256
          %1041 = vsyncadd %s1031, %s1040
          %s1042 = smul.addr %s1038, 128
          %s1043 = scalar_lea.hbm %s2, %s1042
          %s1044 = sshll.u32 %s1034, 4
          %s1045 = int_to_ptr.vmem [resolvable:$true] %s1044
          %1050 = dma.vmem_to_hbm [thread:$0]  %s1045, 256, %s1043, %s1031, 128, 128, 8
        $region40: #{tpu_custom_call.1} parent=27 // pred_fallthru
          _
      $region28: #{tpu_custom_call.1} parent=5 // pred_fallthru
        _
      %p1051 = scmp.le.s32.totalorder 2, %s15
      // Predicated region
      $region41: #{tpu_custom_call.1} parent=5 // pred_check
        %p1052 = pneg %p1051
      $region42: #{tpu_custom_call.1} parent=5 // pred_check_branch
        %1054 = sbr.rel (%p1052) target = $region44
      $region43: #{tpu_custom_call.1} parent=5 // pred_region
        %s1055 = ssub.s32 %s15, 2
        // Predicated region
        $region45: #{tpu_custom_call.1} parent=43 // pred_check
          %p1056 = pneg %p91
        $region46: #{tpu_custom_call.1} parent=43 // pred_check_branch
          %1058 = sbr.rel (%p1056) target = $region48
        $region47: #{tpu_custom_call.1} parent=43 // pred_region
          %s1059 = sand.u32 %s76, 1
          %s1060 = scalar_lea.sflag [#allocation4], %s1059
          %s1061 = sand.u32 %s76, 1
          %s1062 = smul.addr %s1061, 16
          %s1063 = scalar_lea.vmem [#allocation7], %s1062
          %1064 = dma.done %s1060, 256
        $region48: #{tpu_custom_call.1} parent=43 // pred_fallthru
          _
      $region44: #{tpu_custom_call.1} parent=5 // pred_fallthru
        _
    $region6: #{tpu_custom_call.1} parent=1 // loop_footer
      %s19 = sadd.s32 1, %s15
    $region7: #{tpu_custom_call.1} parent=1 // loop_footer_branch
      %14 = sbr.rel target = $region3
    $region8: #{tpu_custom_call.1} parent=1 // loop_exit
      _
    %1065 = vsyncpa [#allocation3], 1
    %s1066 = scalar_lea.sflag [#allocation3], 1
    %1067 = vsyncpa %s1066, 1
    %1068 = vsyncpa [#allocation6], 1
    %1069 = vsyncpa [#allocation4], 1
    %s1070 = scalar_lea.sflag [#allocation4], 1
    %1071 = vsyncpa %s1070, 1

</llo_original>
